<compile_context>
chip_gen: v7x
topology: tpu7x:2x2x1
jax: 0.10.0
libtpu: 0.0.40
codegen_flags: <defaults>
</compile_context>

<pallas_src>
import functools

import numpy as np
import jax
import jax.numpy as jnp
from jax.experimental import pallas as pl
from jax.experimental.pallas import tpu as pltpu

# ----- AntiAliasInterpolation2d(1, 0.25) deterministic parameters -----
SCALE = 0.25
CHANNELS = 1
SIGMA = (1.0 / SCALE - 1.0) / 2.0            # 1.5
KSIZE = 2 * round(SIGMA * 4) + 1             # 13
KA = KSIZE // 2                              # 6
KB = KA - 1 if KSIZE % 2 == 0 else KA        # 6
STRIDE = int(1.0 / SCALE)                    # 4


def _gauss_1d():
    mean = (KSIZE - 1) / 2.0
    x = np.arange(KSIZE, dtype=np.float32)
    return np.exp(-((x - mean) ** 2) / (2.0 * SIGMA ** 2)).astype(np.float32)


def _band_matrix(size_pad, n_out, k1):
    """M[o, r] = k1[r - STRIDE*o]: 1-D Gaussian conv + stride-STRIDE subsample as a matmul."""
    m = np.zeros((n_out, size_pad), dtype=np.float32)
    for o in range(n_out):
        m[o, STRIDE * o: STRIDE * o + KSIZE] = k1
    return m


@functools.lru_cache(maxsize=None)
def _ab_matrices_np(h, w):
    """Cached NUMPY (A, B) band matrices acting on the UNPADDED image (pad cols dropped)."""
    g = _gauss_1d()
    k1 = (g / g.sum()).astype(np.float32)              # separable, exact factorization
    oh = (h - 1) // STRIDE + 1
    ow = (w - 1) // STRIDE + 1
    a = _band_matrix(h + KA + KB, oh, k1)[:, KA:KA + h]        # (OH, H)
    b = _band_matrix(w + KA + KB, ow, k1)[:, KA:KA + w].T      # (W, OW)
    return np.ascontiguousarray(a), np.ascontiguousarray(b)


def _pick_nb(n, h, w, oh, ow, nb_max, vmem_budget_bytes=12 << 20):
    """Images per grid step: as big as the VMEM budget allows, capped so large batches keep
    >= 4 grid steps (v7x 2-TC sharding / pipelining).  cdiv grid -> no divisor constraint."""
    # double-buffered f32 input + f32 scratch + double-buffered f32 output, per image
    per_img = 2 * h * w * 4 + h * ow * 4 + 2 * oh * ow * 4
    nb = max(1, min(nb_max, vmem_budget_bytes // max(per_img, 1)))
    if n >= 8:
        nb = min(nb, -(-n // 4))        # keep >= 4 grid steps when the batch allows it
    nb = int(min(nb, n))
    # Mosaic wants block second-minor dims to be multiples of 8 (sublanes) unless the block
    # spans the full array; bump NB if H / OH aren't 8-aligned, else fall back to one block.
    if nb < n:
        while nb < n and ((nb * h) % 8 != 0 or (nb * oh) % 8 != 0):
            nb += 1
        if (nb * h) % 8 != 0 or (nb * oh) % 8 != 0:
            nb = n
    return nb


def _downsample_kernel(x_ref, b_ref, a_ref, o_ref, t_ref):
    # x_ref: (NB*H, W) f32   b_ref: (W, OW) bf16   a_ref: (OH, H) bf16
    # o_ref: (NB*OH, OW)     t_ref: (NB*H, OW) f32 VMEM scratch
    #
    # Stage 1 (big FLOPs): ONE stacked matmul with the constant B as the MXU RHS
    # (pushed once, reused across all images / grid steps; M = NB*H rows streamed).
    t_ref[...] = jnp.dot(x_ref[...].astype(jnp.bfloat16), b_ref[...],
                         preferred_element_type=jnp.float32)
    # Stage 2 (1/4 of the FLOPs): per-image A @ t[i], unrolled (NB is small & static).
    oh, h = a_ref.shape
    nb = t_ref.shape[0] // h
    a = a_ref[...]
    for i in range(nb):
        o_ref[i * oh:(i + 1) * oh, :] = jnp.dot(
            a, t_ref[i * h:(i + 1) * h, :].astype(jnp.bfloat16),
            preferred_element_type=jnp.float32).astype(o_ref.dtype)


def down_sample(x, nb=None, nb_max=32):
    """x: (N, 1, H, W) float32 -> (N, 1, ceil(H/4), ceil(W/4))  (matches DownSample.forward)."""
    n, c, h, w = x.shape
    assert c == CHANNELS == 1
    oh = (h - 1) // STRIDE + 1
    ow = (w - 1) // STRIDE + 1

    a_np, b_np = _ab_matrices_np(h, w)
    a = jnp.asarray(a_np, dtype=jnp.bfloat16)     # (OH, H)
    b = jnp.asarray(b_np, dtype=jnp.bfloat16)     # (W, OW)

    if nb is None:
        nb = _pick_nb(n, h, w, oh, ow, nb_max)
    nb = max(1, min(int(nb), n))
    steps = pl.cdiv(n, nb)                        # partial last block is write-masked

    # Squeeze C=1 and flatten batch into rows: (N,1,H,W) -> (N*H, W); contiguous, free reshape.
    x2 = x.reshape(n * h, w)

    cost = pl.CostEstimate(
        flops=2 * n * h * w * ow + 2 * n * oh * h * ow,
        transcendentals=0,
        bytes_accessed=4 * n * h * w + 4 * n * oh * ow + 2 * (oh * h + w * ow),
    )

    out = pl.pallas_call(
        _downsample_kernel,
        out_shape=jax.ShapeDtypeStruct((n * oh, ow), x.dtype),
        grid_spec=pltpu.PrefetchScalarGridSpec(
            num_scalar_prefetch=0,
            grid=(steps,),
            in_specs=[
                pl.BlockSpec((nb * h, w), lambda i: (i, 0)),     # unpadded image rows
                pl.BlockSpec((w, ow), lambda i: (0, 0)),         # B, resident in VMEM
                pl.BlockSpec((oh, h), lambda i: (0, 0)),         # A, resident in VMEM
            ],
            out_specs=pl.BlockSpec((nb * oh, ow), lambda i: (i, 0)),
            scratch_shapes=[pltpu.VMEM((nb * h, ow), jnp.float32)],
        ),
        compiler_params=pltpu.CompilerParams(
            dimension_semantics=("parallel",)),
        cost_estimate=cost,
    )(x2, b, a)

    # (N*OH, OW) -> (N, 1, OH, OW): contiguous, free reshape.
    return out.reshape(n, 1, oh, ow)


def _reference(x):
    """Pure-JAX mirror of the PyTorch forward (pad -> 2-D depthwise conv -> [::4, ::4])."""
    g = _gauss_1d()
    k2 = np.outer(g, g)
    k2 = (k2 / k2.sum()).astype(np.float32)
    xp = jnp.pad(x, ((0, 0), (0, 0), (KA, KB), (KA, KB)))
    out = jax.lax.conv_general_dilated(
        xp, jnp.asarray(k2)[None, None], (1, 1), "VALID",
        dimension_numbers=("NCHW", "OIHW", "NCHW"))
    return out[:, :, ::STRIDE, ::STRIDE]


if __name__ == "__main__":
    key = jax.random.PRNGKey(0)

    # Test 1: N=2, 16x16 (single grid step, NB=2), bf16 MXU path vs f32 reference.
    x = jax.random.normal(key, (2, 1, 16, 16), dtype=jnp.float32)
    y = down_sample(x)
    jax.block_until_ready(y)
    y_ref = _reference(x)
    assert y.shape == (2, 1, 4, 4), y.shape
    np.testing.assert_allclose(np.asarray(y), np.asarray(y_ref), rtol=5e-2, atol=5e-2)

    # Test 2: N=3 with NB=2 -> cdiv grid of 2 steps, partial (write-masked) last block.
    x2 = jax.random.normal(jax.random.PRNGKey(1), (3, 1, 32, 32), dtype=jnp.float32)
    y2 = down_sample(x2, nb=2)
    jax.block_until_ready(y2)
    y2_ref = _reference(x2)
    assert y2.shape == (3, 1, 8, 8), y2.shape
    np.testing.assert_allclose(np.asarray(y2), np.asarray(y2_ref), rtol=5e-2, atol=5e-2)

    # Test 3: N=5 with default NB (auto-picked), another non-dividing batch.
    x3 = jax.random.normal(jax.random.PRNGKey(2), (5, 1, 32, 32), dtype=jnp.float32)
    y3 = down_sample(x3, nb=4)
    jax.block_until_ready(y3)
    y3_ref = _reference(x3)
    assert y3.shape == (5, 1, 8, 8), y3.shape
    np.testing.assert_allclose(np.asarray(y3), np.asarray(y3_ref), rtol=5e-2, atol=5e-2)

    print("KERNEL_OK")
</pallas_src>

<mosaic_0001>
module attributes {stable_mosaic.version = 11 : i64} {
  func.func @_downsample_kernel(%arg0: i32, %arg1: memref<32x16xf32, #tpu.memory_space<vmem>>, %arg2: memref<16x4xbf16, #tpu.memory_space<vmem>>, %arg3: memref<4x16xbf16, #tpu.memory_space<vmem>>, %arg4: memref<8x4xf32, #tpu.memory_space<vmem>>, %arg5: memref<32x4xf32, #tpu.memory_space<vmem>>) attributes {dimension_semantics = [#tpu.dimension_semantics<parallel>], iteration_bounds = array<i64: 1>, scalar_prefetch = 0 : i64, scratch_operands = 1 : i64, tpu.core_type = #tpu.core_type<tc>, window_params = [{transform_indices = @transform_0, window_bounds = array<i64: 32, 16>}, {pipeline_mode = #tpu.pipeline_mode<synchronous>, transform_indices = @transform_1, window_bounds = array<i64: 16, 4>}, {pipeline_mode = #tpu.pipeline_mode<synchronous>, transform_indices = @transform_2, window_bounds = array<i64: 4, 16>}, {transform_indices = @transform_3, window_bounds = array<i64: 8, 4>}]} {
    %c0 = arith.constant 0 : index
    %c0_0 = arith.constant 0 : index
    %0 = vector.load %arg1[%c0, %c0_0] : memref<32x16xf32, #tpu.memory_space<vmem>>, vector<32x16xf32>
    %1 = arith.truncf %0 : vector<32x16xf32> to vector<32x16xbf16>
    %c0_1 = arith.constant 0 : index
    %c0_2 = arith.constant 0 : index
    %2 = vector.load %arg2[%c0_1, %c0_2] : memref<16x4xbf16, #tpu.memory_space<vmem>>, vector<16x4xbf16>
    %cst = arith.constant dense<0.000000e+00> : vector<32x4xf32>
    %3 = tpu.matmul %1, %2, %cst {dimension_numbers = #tpu.dot_dimension_numbers<[1], [0], [0], [1], [0, 0, 1, 1], [], []>} : vector<32x16xbf16>, vector<16x4xbf16>, vector<32x4xf32> -> vector<32x4xf32>
    %c0_3 = arith.constant 0 : index
    %c0_4 = arith.constant 0 : index
    %4 = vector.load %arg5[%c0_3, %c0_4] : memref<32x4xf32, #tpu.memory_space<vmem>>, vector<32x4xf32>
    tpu.vector_store %arg5[%c0_3, %c0_4], %3 {strides = array<i32>} : memref<32x4xf32, #tpu.memory_space<vmem>>, vector<32x4xf32>,
    %c0_5 = arith.constant 0 : index
    %c0_6 = arith.constant 0 : index
    %5 = vector.load %arg3[%c0_5, %c0_6] : memref<4x16xbf16, #tpu.memory_space<vmem>>, vector<4x16xbf16>
    %c0_7 = arith.constant 0 : index
    %c0_8 = arith.constant 0 : index
    %6 = vector.load %arg5[%c0_7, %c0_8] : memref<32x4xf32, #tpu.memory_space<vmem>>, vector<16x4xf32>
    %7 = arith.truncf %6 : vector<16x4xf32> to vector<16x4xbf16>
    %cst_9 = arith.constant dense<0.000000e+00> : vector<4x4xf32>
    %8 = tpu.matmul %5, %7, %cst_9 {dimension_numbers = #tpu.dot_dimension_numbers<[1], [0], [0], [1], [0, 0, 1, 1], [], []>} : vector<4x16xbf16>, vector<16x4xbf16>, vector<4x4xf32> -> vector<4x4xf32>
    %c0_10 = arith.constant 0 : index
    %c0_11 = arith.constant 0 : index
    %9 = vector.load %arg4[%c0_10, %c0_11] : memref<8x4xf32, #tpu.memory_space<vmem>>, vector<4x4xf32>
    tpu.vector_store %arg4[%c0_10, %c0_11], %8 {strides = array<i32>} : memref<8x4xf32, #tpu.memory_space<vmem>>, vector<4x4xf32>,
    %c16 = arith.constant 16 : index
    %c0_12 = arith.constant 0 : index
    %10 = vector.load %arg5[%c16, %c0_12] : memref<32x4xf32, #tpu.memory_space<vmem>>, vector<16x4xf32>
    %11 = arith.truncf %10 : vector<16x4xf32> to vector<16x4xbf16>
    %cst_13 = arith.constant dense<0.000000e+00> : vector<4x4xf32>
    %12 = tpu.matmul %5, %11, %cst_13 {dimension_numbers = #tpu.dot_dimension_numbers<[1], [0], [0], [1], [0, 0, 1, 1], [], []>} : vector<4x16xbf16>, vector<16x4xbf16>, vector<4x4xf32> -> vector<4x4xf32>
    %c4 = arith.constant 4 : index
    %c0_14 = arith.constant 0 : index
    %13 = vector.load %arg4[%c4, %c0_14] : memref<8x4xf32, #tpu.memory_space<vmem>>, vector<4x4xf32>
    tpu.vector_store %arg4[%c4, %c0_14], %12 {strides = array<i32>} : memref<8x4xf32, #tpu.memory_space<vmem>>, vector<4x4xf32>,
    return
  }
  func.func @transform_0(%arg0: i32) -> (i32, i32) {
    %c0_i32 = arith.constant 0 : i32
    %c0_i32_0 = arith.constant 0 : i32
    return %arg0, %c0_i32 : i32, i32
  }
  func.func @transform_1(%arg0: i32) -> (i32, i32) {
    %c0_i32 = arith.constant 0 : i32
    %c0_i32_0 = arith.constant 0 : i32
    %c0_i32_1 = arith.constant 0 : i32
    return %c0_i32, %c0_i32_0 : i32, i32
  }
  func.func @transform_2(%arg0: i32) -> (i32, i32) {
    %c0_i32 = arith.constant 0 : i32
    %c0_i32_0 = arith.constant 0 : i32
    %c0_i32_1 = arith.constant 0 : i32
    return %c0_i32, %c0_i32_0 : i32, i32
  }
  func.func @transform_3(%arg0: i32) -> (i32, i32) {
    %c0_i32 = arith.constant 0 : i32
    %c0_i32_0 = arith.constant 0 : i32
    return %arg0, %c0_i32 : i32, i32
  }
}

</mosaic_0001>

<llo_original>
// kernel: tpu_custom_call.1
$region0: #{tpu_custom_call.1}
  #allocation0 [shape = 'u32[]', space=smem, size = 0x4, offset = 0x4, fixed_abs, tag = 'smem constant byte address 0x4 - core index']
  #allocation1 [shape = 'u32[144,128]{1,0:T(1,128)}', space=vmem, size = 0x12000, scoped, tag = 'internal scratch']
  #allocation2 [shape = 'f32[32,4]{1,0:T(8,128)}', space=vmem, size = 0x4000, scoped, tag = 'scratch operand']
  %s0 = inlined_call_operand.vmem [shape: f32[32,16], index: 0, kind: input, shape index: {}]
  %s1 = inlined_call_operand.vmem [shape: bf16[16,4], index: 1, kind: input, shape index: {}]
  %s2 = inlined_call_operand.vmem [shape: bf16[4,16], index: 2, kind: input, shape index: {}]
  %s3 = inlined_call_operand.vmem [shape: f32[8,4], index: 3, kind: output, shape index: {}]
  %s4 = sld [smem:[#allocation0]]
  $region22: #{tpu_custom_call.1} parent=0
    _
  %s6 = ssub.s32 1, %s4
  %s7 = scalar_select 0, %s6, %s4
  // Predicated region
  $region2: #{tpu_custom_call.1} parent=0 // pred_check
    _
  $region3: #{tpu_custom_call.1} parent=0 // pred_check_branch
    %9 = sbr.rel (0) target = $region5
  $region4: #{tpu_custom_call.1} parent=0 // pred_region
    _
  $region5: #{tpu_custom_call.1} parent=0 // pred_fallthru
    _
  // Predicated region
  $region6: #{tpu_custom_call.1} parent=0 // pred_check
    _
  $region7: #{tpu_custom_call.1} parent=0 // pred_check_branch
    %11 = sbr.rel (0) target = $region9
  $region8: #{tpu_custom_call.1} parent=0 // pred_region
    _
  $region9: #{tpu_custom_call.1} parent=0 // pred_fallthru
    _
  // Predicated region
  $region10: #{tpu_custom_call.1} parent=0 // pred_check
    _
  $region11: #{tpu_custom_call.1} parent=0 // pred_check_branch
    %13 = sbr.rel (0) target = $region13
  $region12: #{tpu_custom_call.1} parent=0 // pred_region
    _
  $region13: #{tpu_custom_call.1} parent=0 // pred_fallthru
    _
  %v15 = vld [vmem:[%s0] sm:$0xff]
  %v16 = vld [vmem:[%s0 + $0x8] sm:$0xff]
  %v17 = vld [vmem:[%s0 + $0x10] sm:$0xff]
  %v18 = vld [vmem:[%s0 + $0x18] sm:$0xff]
  %v19 = vpack.c.bf16 %v16, %v15
  %v20 = vpack.c.bf16 %v18, %v17
  %v21 = vld [vmem:[%s1] sm:$0xf]
  %v22 = vld [vmem:[%s1 + $0x4] sm:$0xf]
  %v25 = vunpack.c.l.b16 %v21
  %v26 = vunpack.c.l.b16 %v22
  %v27 = vpack.c.b16 %v26, %v25
  %vm29 = vcmask 130048
  %v31 = vsel %vm29, %v19, 0
  %v34 = vsel %vm29, %v20, 0
  %36 = vmatprep.subr.bf16.mxu0 0
  %37 = vmatpush1.bf16.msra.mxu0 %v27
  %38 = vmatprep.subr.bf16.mxu0 0
  %39 = vmatpush1.bf16.msra.mxu0 0
  %40 = vmatprep.subr.bf16.mxu0 0
  %41 = vmatpush1.bf16.msra.mxu0 0
  %42 = vmatprep.subr.bf16.mxu0 0
  %43 = vmatpush1.bf16.msra.mxu0 0
  %44 = vmatprep.subr.bf16.mxu0 0
  %45 = vmatpush1.bf16.msra.mxu0 0
  %46 = vmatprep.subr.bf16.mxu0 0
  %47 = vmatpush1.bf16.msra.mxu0 0
  %48 = vmatprep.subr.bf16.mxu0 0
  %49 = vmatpush1.bf16.msra.mxu0 0
  %50 = vmatprep.subr.bf16.mxu0 0
  %51 = vmatpush1.bf16.msra.mxu0 0
  %52 = vmatprep.subr.bf16.mxu0 0
  %53 = vmatpush1.bf16.msra.mxu0 0
  %54 = vmatprep.subr.bf16.mxu0 0
  %55 = vmatpush1.bf16.msra.mxu0 0
  %56 = vmatprep.subr.bf16.mxu0 0
  %57 = vmatpush1.bf16.msra.mxu0 0
  %58 = vmatprep.subr.bf16.mxu0 0
  %59 = vmatpush1.bf16.msra.mxu0 0
  %60 = vmatprep.subr.bf16.mxu0 0
  %61 = vmatpush1.bf16.msra.mxu0 0
  %62 = vmatprep.subr.bf16.mxu0 0
  %63 = vmatpush1.bf16.msra.mxu0 0
  %64 = vmatprep.subr.bf16.mxu0 0
  %65 = vmatpush1.bf16.msra.mxu0 0
  %66 = vmatprep.subr.bf16.mxu0 0
  %67 = vmatpush1.bf16.msra.mxu0 0
  %68 = vmatprep.mubr.bf16.mxu0 0
  %69 = vmatmul.mubr.bf16.gmra.mrb[0].mxu0 %v31
  %v70 = vpop.f32.mrb[0].mxu0
  %v71 = vadd.f32 0.0, %v70
  %v72 = vpop.f32.mrb[0].mxu0
  %v73 = vpop.f32.mrb[0].mxu0
  %v74 = vadd.f32 0.0, %v73
  %v75 = vpop.f32.mrb[0].mxu0
  %76 = vmatprep.mubr.bf16.mxu0 0
  %77 = vmatmul.mubr.bf16.gmra.mrb[0].mxu0 %v34
  %v78 = vpop.f32.mrb[0].mxu0
  %v79 = vadd.f32 0.0, %v78
  %v80 = vpop.f32.mrb[0].mxu0
  %v81 = vpop.f32.mrb[0].mxu0
  %v82 = vadd.f32 0.0, %v81
  %v83 = vpop.f32.mrb[0].mxu0
  %84 = vdwg.mxu0
  %vm85 = vcmask 31744
  %86 = vst.msk [vmem:[#allocation2] sm:$0xff] %vm85, %v71
  %87 = vst.msk [vmem:[#allocation2 + $0x8] sm:$0xff] %vm85, %v74
  %88 = vst.msk [vmem:[#allocation2 + $0x10] sm:$0xff] %vm85, %v79
  %89 = vst.msk [vmem:[#allocation2 + $0x18] sm:$0xff] %vm85, %v82
  %v90 = vld [vmem:[%s2] sm:$0x3]
  %v91 = vld [vmem:[#allocation2] sm:$0xff]
  %v92 = vld [vmem:[#allocation2 + $0x8] sm:$0xff]
  %v93 = vpack.c.bf16 %v92, %v91
  %v95 = vsel %vm29, %v90, 0
  %97 = vmatprep.subr.bf16.mxu0 0
  %98 = vmatpush1.bf16.msra.mxu0 %v93
  %99 = vmatprep.subr.bf16.mxu0 0
  %100 = vmatpush1.bf16.msra.mxu0 0
  %101 = vmatprep.subr.bf16.mxu0 0
  %102 = vmatpush1.bf16.msra.mxu0 0
  %103 = vmatprep.subr.bf16.mxu0 0
  %104 = vmatpush1.bf16.msra.mxu0 0
  %105 = vmatprep.subr.bf16.mxu0 0
  %106 = vmatpush1.bf16.msra.mxu0 0
  %107 = vmatprep.subr.bf16.mxu0 0
  %108 = vmatpush1.bf16.msra.mxu0 0
  %109 = vmatprep.subr.bf16.mxu0 0
  %110 = vmatpush1.bf16.msra.mxu0 0
  %111 = vmatprep.subr.bf16.mxu0 0
  %112 = vmatpush1.bf16.msra.mxu0 0
  %113 = vmatprep.subr.bf16.mxu0 0
  %114 = vmatpush1.bf16.msra.mxu0 0
  %115 = vmatprep.subr.bf16.mxu0 0
  %116 = vmatpush1.bf16.msra.mxu0 0
  %117 = vmatprep.subr.bf16.mxu0 0
  %118 = vmatpush1.bf16.msra.mxu0 0
  %119 = vmatprep.subr.bf16.mxu0 0
  %120 = vmatpush1.bf16.msra.mxu0 0
  %121 = vmatprep.subr.bf16.mxu0 0
  %122 = vmatpush1.bf16.msra.mxu0 0
  %123 = vmatprep.subr.bf16.mxu0 0
  %124 = vmatpush1.bf16.msra.mxu0 0
  %125 = vmatprep.subr.bf16.mxu0 0
  %126 = vmatpush1.bf16.msra.mxu0 0
  %127 = vmatprep.subr.bf16.mxu0 0
  %128 = vmatpush1.bf16.msra.mxu0 0
  %129 = vmatprep.mubr.bf16.mxu0 0
  %130 = vmatmul.mubr.bf16.gmra.mrb[0].mxu0 %v95
  %v131 = vpop.f32.mrb[0].mxu0
  %v132 = vadd.f32 0.0, %v131
  %v133 = vpop.f32.mrb[0].mxu0
  %v134 = vpop.f32.mrb[0].mxu0
  %v135 = vpop.f32.mrb[0].mxu0
  %136 = vdwg.mxu0
  %vm137 = vcmask 27648
  %138 = vst.msk [vmem:[%s3] sm:$0xf] %vm137, %v132
  %v139 = vld [vmem:[#allocation2 + $0x10] sm:$0xff]
  %v140 = vld [vmem:[#allocation2 + $0x18] sm:$0xff]
  %v141 = vpack.c.bf16 %v140, %v139
  %142 = vmatprep.subr.bf16.mxu0 0
  %143 = vmatpush1.bf16.msra.mxu0 %v141
  %144 = vmatprep.subr.bf16.mxu0 0
  %145 = vmatpush1.bf16.msra.mxu0 0
  %146 = vmatprep.subr.bf16.mxu0 0
  %147 = vmatpush1.bf16.msra.mxu0 0
  %148 = vmatprep.subr.bf16.mxu0 0
  %149 = vmatpush1.bf16.msra.mxu0 0
  %150 = vmatprep.subr.bf16.mxu0 0
  %151 = vmatpush1.bf16.msra.mxu0 0
  %152 = vmatprep.subr.bf16.mxu0 0
  %153 = vmatpush1.bf16.msra.mxu0 0
  %154 = vmatprep.subr.bf16.mxu0 0
  %155 = vmatpush1.bf16.msra.mxu0 0
  %156 = vmatprep.subr.bf16.mxu0 0
  %157 = vmatpush1.bf16.msra.mxu0 0
  %158 = vmatprep.subr.bf16.mxu0 0
  %159 = vmatpush1.bf16.msra.mxu0 0
  %160 = vmatprep.subr.bf16.mxu0 0
  %161 = vmatpush1.bf16.msra.mxu0 0
  %162 = vmatprep.subr.bf16.mxu0 0
  %163 = vmatpush1.bf16.msra.mxu0 0
  %164 = vmatprep.subr.bf16.mxu0 0
  %165 = vmatpush1.bf16.msra.mxu0 0
  %166 = vmatprep.subr.bf16.mxu0 0
  %167 = vmatpush1.bf16.msra.mxu0 0
  %168 = vmatprep.subr.bf16.mxu0 0
  %169 = vmatpush1.bf16.msra.mxu0 0
  %170 = vmatprep.subr.bf16.mxu0 0
  %171 = vmatpush1.bf16.msra.mxu0 0
  %172 = vmatprep.subr.bf16.mxu0 0
  %173 = vmatpush1.bf16.msra.mxu0 0
  %174 = vmatprep.mubr.bf16.mxu0 0
  %175 = vmatmul.mubr.bf16.gmra.mrb[0].mxu0 %v95
  %v176 = vpop.f32.mrb[0].mxu0
  %v177 = vadd.f32 0.0, %v176
  %v178 = vpop.f32.mrb[0].mxu0
  %v179 = vpop.f32.mrb[0].mxu0
  %v180 = vpop.f32.mrb[0].mxu0
  %181 = vdwg.mxu0
  %182 = vst.msk [vmem:[%s3 + $0x4] sm:$0xf] %vm137, %v177
  // Predicated region
  $region14: #{tpu_custom_call.1} parent=0 // pred_check
    _
  $region15: #{tpu_custom_call.1} parent=0 // pred_check_branch
    %184 = sbr.rel (0) target = $region17
  $region16: #{tpu_custom_call.1} parent=0 // pred_region
    _
  $region17: #{tpu_custom_call.1} parent=0 // pred_fallthru
    _
  // Predicated region
  $region18: #{tpu_custom_call.1} parent=0 // pred_check
    _
  $region19: #{tpu_custom_call.1} parent=0 // pred_check_branch
    %186 = sbr.rel (0) target = $region21
  $region20: #{tpu_custom_call.1} parent=0 // pred_region
    _
  $region21: #{tpu_custom_call.1} parent=0 // pred_fallthru
    _

</llo_original>
